<compile_context>
chip_gen: v6e
topology: v6e:2x2x1
jax: 0.10.0
libtpu: 0.0.40
codegen_flags: <defaults>
</compile_context>

<pallas_src>
import functools
import math

import jax
import jax.numpy as jnp
from jax.experimental import pallas as pl
from jax.experimental.pallas import tpu as pltpu


def _round_up(x: int, m: int) -> int:
    return ((x + m - 1) // m) * m


def _mlp_kernel(x_ref, w_ref, b_ref, o_ref, *, n_layers: int, n_inputs: int,
                n_outputs: int):
    """Fused MLP for one batch tile.

    x_ref: (TILE_B, n_inputs) f32      w_ref: (L, P, P) bf16 (zero padded)
    b_ref: (L, 1, P) f32 (zero padded) o_ref: (TILE_B, n_outputs) f32
    Padded weight columns/rows are exact zeros, so padded lanes of the running
    activation stay exactly zero through bias-add + ReLU.
    """
    P = w_ref.shape[-1]
    n_last = min(P, _round_up(n_outputs, 128))   # trim last-layer N if P > 128

    # fc1: contract only the real n_inputs rows of the padded weight tile, so
    # the wrapper never has to materialize a lane-padded copy of x.
    h = jnp.dot(x_ref[...].astype(jnp.bfloat16), w_ref[0, :n_inputs, :],
                preferred_element_type=jnp.float32)
    h = jnp.maximum(h + b_ref[0], 0.0)

    # Hidden layers, fully unrolled (L is small) for LLO scheduling visibility.
    for li in range(1, n_layers - 1):
        h = jnp.dot(h.astype(jnp.bfloat16), w_ref[li],
                    preferred_element_type=jnp.float32)
        h = jnp.maximum(h + b_ref[li], 0.0)

    # Output layer (no activation), store only the real output columns.
    last = n_layers - 1
    h = jnp.dot(h.astype(jnp.bfloat16), w_ref[last, :, :n_last],
                preferred_element_type=jnp.float32)
    h = h + b_ref[last, :, :n_last]
    o_ref[...] = h[:, :n_outputs].astype(o_ref.dtype)


def _mlp_pallas(x, w_stack, b_stack, *, n_layers, n_inputs, n_outputs, tile_b):
    """x: (B_pad, n_inputs) f32, w_stack: (L,P,P) bf16, b_stack: (L,1,P) f32."""
    B_pad = x.shape[0]
    L, P, _ = w_stack.shape
    kernel = functools.partial(_mlp_kernel, n_layers=n_layers,
                               n_inputs=n_inputs, n_outputs=n_outputs)

    cost = pl.CostEstimate(
        flops=2 * B_pad * P * P * n_layers,
        transcendentals=0,
        bytes_accessed=(x.size * x.dtype.itemsize
                        + w_stack.size * w_stack.dtype.itemsize
                        + b_stack.size * b_stack.dtype.itemsize
                        + B_pad * n_outputs * 4),
    )

    # Resident weights/biases + double-buffered x/out tiles + activation headroom.
    vmem_need = (w_stack.size * w_stack.dtype.itemsize
                 + b_stack.size * b_stack.dtype.itemsize
                 + 2 * tile_b * (n_inputs + n_outputs) * 4
                 + 4 * tile_b * P * 4)
    cp_kwargs = dict(dimension_semantics=("parallel",))
    if 2 * vmem_need > 32 * 1024 * 1024:
        # Only raise the scoped-VMEM limit when the default would be exceeded
        # (scaled-up nNodes / v5e's 16 MiB default / v7x's 64 MiB physical).
        cp_kwargs["vmem_limit_bytes"] = int(min(2 * vmem_need, 100 * 1024 * 1024))

    return pl.pallas_call(
        kernel,
        out_shape=jax.ShapeDtypeStruct((B_pad, n_outputs), x.dtype),
        grid=(B_pad // tile_b,),
        in_specs=[
            pl.BlockSpec((tile_b, n_inputs), lambda i: (i, 0)),   # streams
            pl.BlockSpec((L, P, P), lambda i: (0, 0, 0)),         # weights: VMEM-resident
            pl.BlockSpec((L, 1, P), lambda i: (0, 0, 0)),         # biases:  VMEM-resident
        ],
        out_specs=pl.BlockSpec((tile_b, n_outputs), lambda i: (i, 0)),
        compiler_params=pltpu.CompilerParams(**cp_kwargs),
        cost_estimate=cost,
    )(x, w_stack, b_stack)


def _fused_forward(x, w_stack, b_stack, *, n_layers, n_inputs, n_outputs):
    """Pad batch to the tile size (if needed), run the fused kernel, un-pad."""
    B = x.shape[0]
    # >=8 rows (sublane alignment); cap at 256 rows per tile (MXU-saturating on
    # v6e/v7x, comfortably within vregs for the unrolled layer chain).
    tile_b = min(256, _round_up(B, 8))
    B_pad = _round_up(B, tile_b)
    if B_pad != B:
        x = jnp.pad(x, ((0, B_pad - B), (0, 0)))
    y = _mlp_pallas(x, w_stack, b_stack, n_layers=n_layers,
                    n_inputs=n_inputs, n_outputs=n_outputs, tile_b=tile_b)
    return y[:B] if B_pad != B else y


class PallasTorchModel:
    """Pallas/JAX re-implementation of TorchModel (MLP with ReLU hidden layers).

    Forward semantics (last_activation == F.linear -> identity on logits):
        x = relu(fc1(x))
        for i in range(nLayer): x = relu(fc_{i+2}(x))
        x = output(x)
    """

    def __init__(self, nInputs, nOutputs, nLayer, nNodes, key, dtype=jnp.float32):
        self.nInputs = int(nInputs)
        self.nOutputs = int(nOutputs)
        dims = [nInputs] + [nNodes] * (nLayer + 1) + [nOutputs]
        self.n_layers = len(dims) - 1                    # nLayer + 2 linear layers
        P = max(_round_up(d, 128) for d in dims)         # common lane-dense width
        self.P = P
        # TODO(synk): pad each layer to its own 128-multiple (instead of the
        # global max P) if layer widths ever diverge strongly (large nNodes vs
        # tiny nOutputs).

        self.params = []                                 # unpadded f32 (W (in,out), b (1,out))
        keys = jax.random.split(key, 2 * self.n_layers)
        ws_pad, bs_pad = [], []
        for li in range(self.n_layers):
            fan_in, fan_out = dims[li], dims[li + 1]
            bound = 1.0 / math.sqrt(fan_in)              # mirrors nn.Linear default init
            w = jax.random.uniform(keys[2 * li], (fan_in, fan_out),
                                   dtype=dtype, minval=-bound, maxval=bound)
            b = jax.random.uniform(keys[2 * li + 1], (1, fan_out),
                                   dtype=dtype, minval=-bound, maxval=bound)
            self.params.append((w, b))
            ws_pad.append(jnp.zeros((P, P), jnp.bfloat16)
                          .at[:fan_in, :fan_out].set(w.astype(jnp.bfloat16)))
            bs_pad.append(jnp.zeros((1, P), jnp.float32).at[:, :fan_out].set(b))
        self.w_stack = jnp.stack(ws_pad)                 # (L, P, P) bf16 (MXU-native)
        self.b_stack = jnp.stack(bs_pad)                 # (L, 1, P) f32

        # One jitted executable for the whole forward (single dispatch).
        self._forward = jax.jit(functools.partial(
            _fused_forward, n_layers=self.n_layers,
            n_inputs=self.nInputs, n_outputs=self.nOutputs))

    def __call__(self, x):
        # TODO(synk): if last_activation were e.g. F.softmax(dim=1), apply it here.
        return self._forward(x, self.w_stack, self.b_stack)


def _reference_forward(x, params):
    for i, (w, b) in enumerate(params):
        x = x @ w + b
        if i != len(params) - 1:
            x = jnp.maximum(x, 0.0)
    return x


if __name__ == "__main__":
    key = jax.random.PRNGKey(0)
    k_param, k_x = jax.random.split(key)

    nInputs, nOutputs, nLayer, nNodes = 32, 4, 2, 32
    batch = 8

    model = PallasTorchModel(nInputs, nOutputs, nLayer, nNodes, k_param)
    x = jax.random.normal(k_x, (batch, nInputs), dtype=jnp.float32)

    out = model(x)
    out = jax.block_until_ready(out)

    ref = _reference_forward(x, model.params)   # pure-f32 reference
    assert out.shape == (batch, nOutputs)
    # bf16 weights/activations with f32 accumulation -> loosened tolerance.
    assert jnp.allclose(out, ref, atol=3e-2, rtol=3e-2), (
        f"max abs err {jnp.max(jnp.abs(out - ref))}")

    print("KERNEL_OK")
</pallas_src>

<mosaic_0001>
module attributes {stable_mosaic.version = 11 : i64} {
  func.func @_mlp_kernel(%arg0: i32, %arg1: memref<8x32xf32, #tpu.memory_space<vmem>>, %arg2: memref<4x128x128xbf16, #tpu.memory_space<vmem>>, %arg3: memref<4x1x128xf32, #tpu.memory_space<vmem>>, %arg4: memref<8x4xf32, #tpu.memory_space<vmem>>) attributes {dimension_semantics = [#tpu.dimension_semantics<parallel>], iteration_bounds = array<i64: 1>, scalar_prefetch = 0 : i64, scratch_operands = 0 : i64, tpu.core_type = #tpu.core_type<tc>, window_params = [{transform_indices = @transform_0, window_bounds = array<i64: 8, 32>}, {pipeline_mode = #tpu.pipeline_mode<synchronous>, transform_indices = @transform_1, window_bounds = array<i64: 4, 128, 128>}, {pipeline_mode = #tpu.pipeline_mode<synchronous>, transform_indices = @transform_2, window_bounds = array<i64: 4, 1, 128>}, {transform_indices = @transform_3, window_bounds = array<i64: 8, 4>}]} {
    %c0 = arith.constant 0 : index
    %c0_0 = arith.constant 0 : index
    %0 = vector.load %arg1[%c0, %c0_0] : memref<8x32xf32, #tpu.memory_space<vmem>>, vector<8x32xf32>
    %1 = arith.truncf %0 : vector<8x32xf32> to vector<8x32xbf16>
    %c0_1 = arith.constant 0 : index
    %c0_2 = arith.constant 0 : index
    %c0_3 = arith.constant 0 : index
    %2 = vector.load %arg2[%c0_1, %c0_2, %c0_3] : memref<4x128x128xbf16, #tpu.memory_space<vmem>>, vector<1x32x128xbf16>
    %3 = vector.shape_cast %2 : vector<1x32x128xbf16> to vector<32x128xbf16>
    %cst = arith.constant dense<0.000000e+00> : vector<8x128xf32>
    %4 = tpu.matmul %1, %3, %cst {dimension_numbers = #tpu.dot_dimension_numbers<[1], [0], [0], [1], [0, 0, 1, 1], [], []>} : vector<8x32xbf16>, vector<32x128xbf16>, vector<8x128xf32> -> vector<8x128xf32>
    %c0_4 = arith.constant 0 : index
    %c0_5 = arith.constant 0 : index
    %c0_6 = arith.constant 0 : index
    %5 = vector.load %arg3[%c0_4, %c0_5, %c0_6] : memref<4x1x128xf32, #tpu.memory_space<vmem>>, vector<1x1x128xf32>
    %6 = vector.shape_cast %5 : vector<1x1x128xf32> to vector<1x128xf32>
    %7 = vector.broadcast %6 : vector<1x128xf32> to vector<8x128xf32>
    %8 = arith.addf %4, %7 : vector<8x128xf32>
    %cst_7 = arith.constant 0.000000e+00 : f32
    %9 = vector.broadcast %cst_7 : f32 to vector<8x128xf32>
    %10 = arith.maximumf %8, %9 : vector<8x128xf32>
    %11 = arith.truncf %10 : vector<8x128xf32> to vector<8x128xbf16>
    %c1 = arith.constant 1 : index
    %c0_8 = arith.constant 0 : index
    %c0_9 = arith.constant 0 : index
    %12 = vector.load %arg2[%c1, %c0_8, %c0_9] : memref<4x128x128xbf16, #tpu.memory_space<vmem>>, vector<1x128x128xbf16>
    %13 = vector.shape_cast %12 : vector<1x128x128xbf16> to vector<128x128xbf16>
    %cst_10 = arith.constant dense<0.000000e+00> : vector<8x128xf32>
    %14 = tpu.matmul %11, %13, %cst_10 {dimension_numbers = #tpu.dot_dimension_numbers<[1], [0], [0], [1], [0, 0, 1, 1], [], []>} : vector<8x128xbf16>, vector<128x128xbf16>, vector<8x128xf32> -> vector<8x128xf32>
    %c1_11 = arith.constant 1 : index
    %c0_12 = arith.constant 0 : index
    %c0_13 = arith.constant 0 : index
    %15 = vector.load %arg3[%c1_11, %c0_12, %c0_13] : memref<4x1x128xf32, #tpu.memory_space<vmem>>, vector<1x1x128xf32>
    %16 = vector.shape_cast %15 : vector<1x1x128xf32> to vector<1x128xf32>
    %17 = vector.broadcast %16 : vector<1x128xf32> to vector<8x128xf32>
    %18 = arith.addf %14, %17 : vector<8x128xf32>
    %cst_14 = arith.constant 0.000000e+00 : f32
    %19 = vector.broadcast %cst_14 : f32 to vector<8x128xf32>
    %20 = arith.maximumf %18, %19 : vector<8x128xf32>
    %21 = arith.truncf %20 : vector<8x128xf32> to vector<8x128xbf16>
    %c2 = arith.constant 2 : index
    %c0_15 = arith.constant 0 : index
    %c0_16 = arith.constant 0 : index
    %22 = vector.load %arg2[%c2, %c0_15, %c0_16] : memref<4x128x128xbf16, #tpu.memory_space<vmem>>, vector<1x128x128xbf16>
    %23 = vector.shape_cast %22 : vector<1x128x128xbf16> to vector<128x128xbf16>
    %cst_17 = arith.constant dense<0.000000e+00> : vector<8x128xf32>
    %24 = tpu.matmul %21, %23, %cst_17 {dimension_numbers = #tpu.dot_dimension_numbers<[1], [0], [0], [1], [0, 0, 1, 1], [], []>} : vector<8x128xbf16>, vector<128x128xbf16>, vector<8x128xf32> -> vector<8x128xf32>
    %c2_18 = arith.constant 2 : index
    %c0_19 = arith.constant 0 : index
    %c0_20 = arith.constant 0 : index
    %25 = vector.load %arg3[%c2_18, %c0_19, %c0_20] : memref<4x1x128xf32, #tpu.memory_space<vmem>>, vector<1x1x128xf32>
    %26 = vector.shape_cast %25 : vector<1x1x128xf32> to vector<1x128xf32>
    %27 = vector.broadcast %26 : vector<1x128xf32> to vector<8x128xf32>
    %28 = arith.addf %24, %27 : vector<8x128xf32>
    %cst_21 = arith.constant 0.000000e+00 : f32
    %29 = vector.broadcast %cst_21 : f32 to vector<8x128xf32>
    %30 = arith.maximumf %28, %29 : vector<8x128xf32>
    %31 = arith.truncf %30 : vector<8x128xf32> to vector<8x128xbf16>
    %c3 = arith.constant 3 : index
    %c0_22 = arith.constant 0 : index
    %c0_23 = arith.constant 0 : index
    %32 = vector.load %arg2[%c3, %c0_22, %c0_23] : memref<4x128x128xbf16, #tpu.memory_space<vmem>>, vector<1x128x128xbf16>
    %33 = vector.shape_cast %32 : vector<1x128x128xbf16> to vector<128x128xbf16>
    %cst_24 = arith.constant dense<0.000000e+00> : vector<8x128xf32>
    %34 = tpu.matmul %31, %33, %cst_24 {dimension_numbers = #tpu.dot_dimension_numbers<[1], [0], [0], [1], [0, 0, 1, 1], [], []>} : vector<8x128xbf16>, vector<128x128xbf16>, vector<8x128xf32> -> vector<8x128xf32>
    %c3_25 = arith.constant 3 : index
    %c0_26 = arith.constant 0 : index
    %c0_27 = arith.constant 0 : index
    %35 = vector.load %arg3[%c3_25, %c0_26, %c0_27] : memref<4x1x128xf32, #tpu.memory_space<vmem>>, vector<1x1x128xf32>
    %36 = vector.shape_cast %35 : vector<1x1x128xf32> to vector<1x128xf32>
    %37 = vector.broadcast %36 : vector<1x128xf32> to vector<8x128xf32>
    %38 = arith.addf %34, %37 : vector<8x128xf32>
    %39 = vector.extract_strided_slice %38 {offsets = [0, 0], sizes = [8, 4], strides = [1, 1]} : vector<8x128xf32> to vector<8x4xf32>
    %c0_28 = arith.constant 0 : index
    %c0_29 = arith.constant 0 : index
    %40 = vector.load %arg4[%c0_28, %c0_29] : memref<8x4xf32, #tpu.memory_space<vmem>>, vector<8x4xf32>
    tpu.vector_store %arg4[%c0_28, %c0_29], %39 {strides = array<i32>} : memref<8x4xf32, #tpu.memory_space<vmem>>, vector<8x4xf32>,
    return
  }
  func.func @transform_0(%arg0: i32) -> (i32, i32) {
    %c0_i32 = arith.constant 0 : i32
    %c0_i32_0 = arith.constant 0 : i32
    return %arg0, %c0_i32 : i32, i32
  }
  func.func @transform_1(%arg0: i32) -> (i32, i32, i32) {
    %c0_i32 = arith.constant 0 : i32
    %c0_i32_0 = arith.constant 0 : i32
    %c0_i32_1 = arith.constant 0 : i32
    %c0_i32_2 = arith.constant 0 : i32
    return %c0_i32, %c0_i32_0, %c0_i32_1 : i32, i32, i32
  }
  func.func @transform_2(%arg0: i32) -> (i32, i32, i32) {
    %c0_i32 = arith.constant 0 : i32
    %c0_i32_0 = arith.constant 0 : i32
    %c0_i32_1 = arith.constant 0 : i32
    %c0_i32_2 = arith.constant 0 : i32
    return %c0_i32, %c0_i32_0, %c0_i32_1 : i32, i32, i32
  }
  func.func @transform_3(%arg0: i32) -> (i32, i32) {
    %c0_i32 = arith.constant 0 : i32
    %c0_i32_0 = arith.constant 0 : i32
    return %arg0, %c0_i32 : i32, i32
  }
}

</mosaic_0001>

<llo_original>
// kernel: _fused_forward.1
$region0: #{_fused_forward.1}
  #allocation0 [shape = 'u32[]', space=smem, size = 0x4, offset = 0x4, fixed_abs, tag = 'smem constant byte address 0x4 - core index']
  #allocation1 [shape = 'u32[144,128]{1,0:T(1,128)}', space=vmem, size = 0x12000, scoped, tag = 'internal scratch']
  %s0 = inlined_call_operand.hbm [shape: f32[8,32], index: 0, kind: input, shape index: {}]
  %s1 = inlined_call_operand.hbm [shape: bf16[4,128,128], index: 1, kind: input, shape index: {}]
  %s2 = inlined_call_operand.hbm [shape: f32[4,1,128], index: 2, kind: input, shape index: {}]
  %s3 = inlined_call_operand.vmem [shape: f32[8,4], index: 3, kind: output, shape index: {}]
  %s4 = sld [smem:[#allocation0]]
  $region34: #{_fused_forward.1} parent=0
    _
  %s6 = ssub.s32 1, %s4
  %s7 = scalar_select 0, %s6, %s4
  $region1: #{_fused_forward.1} parent=0
    #allocation2 [shape = 'u8[4096]{0}', space=vmem, size = 0x1000, scoped, tag = 'input window, operand 0, single buffered']
    #allocation3 [shape = 's32[1]{0}', space=sflag, size = 0x4, scoped, tag = 'scoped memory for _fused_forward.1']
    #allocation4 [shape = 'u8[131072]{0}', space=vmem, size = 0x20000, scoped, tag = 'input window, operand 1, single buffered']
    #allocation5 [shape = 's32[1]{0}', space=sflag, size = 0x4, scoped, tag = 'scoped memory for _fused_forward.1']
    #allocation6 [shape = 'u8[2048]{0}', space=vmem, size = 0x800, scoped, tag = 'input window, operand 2, single buffered']
    %8 = vsyncpa [#allocation3], 0
    %9 = vsyncpa [#allocation5], 0
    // Predicated region
    $region2: #{_fused_forward.1} parent=1 // pred_check
      _
    $region3: #{_fused_forward.1} parent=1 // pred_check_branch
      %11 = sbr.rel (0) target = $region5
    $region4: #{_fused_forward.1} parent=1 // pred_region
      %s13 = ssub.s32 128, 128
      %14 = vsyncadd [#allocation3], %s13
      %s16 = sshll.u32 [#allocation2], 4
      %s17 = int_to_ptr.vmem [resolvable:$true] %s16
      %19 = dma.hbm_to_vmem [thread:$0]  %s0, 128, %s17, [#allocation3]
    $region5: #{_fused_forward.1} parent=1 // pred_fallthru
      _
    // Predicated region
    $region6: #{_fused_forward.1} parent=1 // pred_check
      _
    $region7: #{_fused_forward.1} parent=1 // pred_check_branch
      %21 = sbr.rel (0) target = $region9
    $region8: #{_fused_forward.1} parent=1 // pred_region
      %s23 = ssub.s32 4096, 4096
      %24 = vsyncadd [#allocation5], %s23
      %s25 = sshll.u32 [#allocation4], 4
      %s26 = int_to_ptr.vmem [resolvable:$true] %s25
      %31 = dma.hbm_to_vmem [thread:$0]  %s1, 4096, %s26, [#allocation5], 64, 64, 4
    $region9: #{_fused_forward.1} parent=1 // pred_fallthru
      _
    // Predicated region
    $region10: #{_fused_forward.1} parent=1 // pred_check
      _
    $region11: #{_fused_forward.1} parent=1 // pred_check_branch
      %33 = sbr.rel (0) target = $region13
    $region12: #{_fused_forward.1} parent=1 // pred_region
      %s35 = ssub.s32 64, 64
      %36 = vsyncadd [#allocation5], %s35
      %s37 = sshll.u32 [#allocation6], 4
      %s38 = int_to_ptr.vmem [resolvable:$true] %s37
      %43 = dma.hbm_to_vmem [thread:$0]  %s2, 64, %s38, [#allocation5], 16, 16, 1
    $region13: #{_fused_forward.1} parent=1 // pred_fallthru
      _
    // Predicated region
    $region14: #{_fused_forward.1} parent=1 // pred_check
      _
    $region15: #{_fused_forward.1} parent=1 // pred_check_branch
      %45 = sbr.rel (0) target = $region17
    $region16: #{_fused_forward.1} parent=1 // pred_region
      %46 = dma.done [#allocation3], 128
    $region17: #{_fused_forward.1} parent=1 // pred_fallthru
      _
    // Predicated region
    $region18: #{_fused_forward.1} parent=1 // pred_check
      _
    $region19: #{_fused_forward.1} parent=1 // pred_check_branch
      %48 = sbr.rel (0) target = $region21
    $region20: #{_fused_forward.1} parent=1 // pred_region
      %49 = dma.done [#allocation5], 4096
    $region21: #{_fused_forward.1} parent=1 // pred_fallthru
      _
    // Predicated region
    $region22: #{_fused_forward.1} parent=1 // pred_check
      _
    $region23: #{_fused_forward.1} parent=1 // pred_check_branch
      %51 = sbr.rel (0) target = $region25
    $region24: #{_fused_forward.1} parent=1 // pred_region
      %52 = dma.done [#allocation5], 64
    $region25: #{_fused_forward.1} parent=1 // pred_fallthru
      _
    %v54 = vld [vmem:[#allocation2] sm:$0xff]
    %v55 = vpack.c.bf16 %v54, %v54
    %v56 = vld [vmem:[#allocation4] sm:$0xf]
    %v57 = vld [vmem:[#allocation4 + $0x4] sm:$0xf]
    %v58 = vld [vmem:[#allocation4 + $0x8] sm:$0xf]
    %v59 = vld [vmem:[#allocation4 + $0xc] sm:$0xf]
    %v60 = vld [vmem:[#allocation6] sm:$0x1]
    %v62 = vlaneseq
    %v63 = vshrl.u32 %v62, 7
    %v64 = vsub.s32 0, %v63
    %v65 = vrot.slane %v60, %v64
    %v71 = vunpack.c.l.b16 %v56
    %v72 = vunpack.c.l.b16 %v57
    %v73 = vunpack.c.l.b16 %v58
    %v74 = vunpack.c.l.b16 %v59
    %v75 = vpack.c.b16 %v72, %v71
    %v76 = vpack.c.b16 %v74, %v73
    %vm79 = vcmask 261120
    %v81 = vsel %vm79, %v55, 0
    %83 = vmatprep.subr.bf16.mxu0 0
    %84 = vmatpush1.bf16.msra.mxu0 0
    %85 = vmatprep.subr.bf16.mxu0 0
    %86 = vmatpush1.bf16.msra.mxu0 0
    %87 = vmatprep.subr.bf16.mxu0 0
    %88 = vmatpush1.bf16.msra.mxu0 0
    %89 = vmatprep.subr.bf16.mxu0 0
    %90 = vmatpush1.bf16.msra.mxu0 0
    %91 = vmatprep.subr.bf16.mxu0 0
    %92 = vmatpush1.bf16.msra.mxu0 0
    %93 = vmatprep.subr.bf16.mxu0 0
    %94 = vmatpush1.bf16.msra.mxu0 0
    %95 = vmatprep.subr.bf16.mxu0 0
    %96 = vmatpush1.bf16.msra.mxu0 %v76
    %97 = vmatprep.subr.bf16.mxu0 0
    %98 = vmatpush1.bf16.msra.mxu0 %v75
    %99 = vmatprep.subr.bf16.mxu0 0
    %100 = vmatpush2.bf16.msra.mxu0 0
    %101 = vmatprep.subr.bf16.mxu0 0
    %102 = vmatpush2.bf16.msra.mxu0 0
    %103 = vmatprep.subr.bf16.mxu0 0
    %104 = vmatpush2.bf16.msra.mxu0 0
    %105 = vmatprep.subr.bf16.mxu0 0
    %106 = vmatpush2.bf16.msra.mxu0 0
    %107 = vmatprep.subr.bf16.mxu0 0
    %108 = vmatpush2.bf16.msra.mxu0 0
    %109 = vmatprep.subr.bf16.mxu0 0
    %110 = vmatpush2.bf16.msra.mxu0 0
    %111 = vmatprep.subr.bf16.mxu0 0
    %112 = vmatpush2.bf16.msra.mxu0 0
    %113 = vmatprep.subr.bf16.mxu0 0
    %114 = vmatpush2.bf16.msra.mxu0 0
    %115 = vmatprep.mubr.bf16.mxu0 0
    %116 = vmatmul.mubr.bf16.gmra.mxu0 %v81
    %v117 = vpop.f32.mrf.mxu0
    %v118 = vadd.f32 %v65, %v117
    %v119 = vpop.f32.mrf.mxu0
    %v120 = vpop.f32.mrf.mxu0
    %v121 = vpop.f32.mrf.mxu0
    %122 = vdwg.mxu0
    %v123 = vmax.f32 %v118, 0.0
    %v124 = vpack.c.bf16 %v123, %v123
    %s125 = scalar_lea.vmem [#allocation4], 64
    %v126 = vld [vmem:[%s125] sm:$0xf]
    %v127 = vld [vmem:[%s125 + $0x4] sm:$0xf]
    %v128 = vld [vmem:[%s125 + $0x8] sm:$0xf]
    %v129 = vld [vmem:[%s125 + $0xc] sm:$0xf]
    %v130 = vld [vmem:[%s125 + $0x10] sm:$0xf]
    %v131 = vld [vmem:[%s125 + $0x14] sm:$0xf]
    %v132 = vld [vmem:[%s125 + $0x18] sm:$0xf]
    %v133 = vld [vmem:[%s125 + $0x1c] sm:$0xf]
    %v134 = vld [vmem:[%s125 + $0x20] sm:$0xf]
    %v135 = vld [vmem:[%s125 + $0x24] sm:$0xf]
    %v136 = vld [vmem:[%s125 + $0x28] sm:$0xf]
    %v137 = vld [vmem:[%s125 + $0x2c] sm:$0xf]
    %v138 = vld [vmem:[%s125 + $0x30] sm:$0xf]
    %v139 = vld [vmem:[%s125 + $0x34] sm:$0xf]
    %v140 = vld [vmem:[%s125 + $0x38] sm:$0xf]
    %v141 = vld [vmem:[%s125 + $0x3c] sm:$0xf]
    %s142 = scalar_lea.vmem [#allocation6], 1
    %v143 = vld [vmem:[%s142] sm:$0x1]
    %v145 = vlaneseq
    %v146 = vshrl.u32 %v145, 7
    %v147 = vsub.s32 0, %v146
    %v148 = vrot.slane %v143, %v147
    %v166 = vunpack.c.l.b16 %v126
    %v167 = vunpack.c.l.b16 %v127
    %v168 = vunpack.c.l.b16 %v128
    %v169 = vunpack.c.l.b16 %v129
    %v170 = vunpack.c.l.b16 %v130
    %v171 = vunpack.c.l.b16 %v131
    %v172 = vunpack.c.l.b16 %v132
    %v173 = vunpack.c.l.b16 %v133
    %v174 = vunpack.c.l.b16 %v134
    %v175 = vunpack.c.l.b16 %v135
    %v176 = vunpack.c.l.b16 %v136
    %v177 = vunpack.c.l.b16 %v137
    %v178 = vunpack.c.l.b16 %v138
    %v179 = vunpack.c.l.b16 %v139
    %v180 = vunpack.c.l.b16 %v140
    %v181 = vunpack.c.l.b16 %v141
    %v182 = vpack.c.b16 %v167, %v166
    %v183 = vpack.c.b16 %v169, %v168
    %v184 = vpack.c.b16 %v171, %v170
    %v185 = vpack.c.b16 %v173, %v172
    %v186 = vpack.c.b16 %v175, %v174
    %v187 = vpack.c.b16 %v177, %v176
    %v188 = vpack.c.b16 %v179, %v178
    %v189 = vpack.c.b16 %v181, %v180
    %198 = vmatprep.subr.bf16.mxu0 0
    %199 = vmatpush1.bf16.msra.mxu0 %v189
    %200 = vmatprep.subr.bf16.mxu0 0
    %201 = vmatpush1.bf16.msra.mxu0 %v188
    %202 = vmatprep.subr.bf16.mxu0 0
    %203 = vmatpush1.bf16.msra.mxu0 %v187
    %204 = vmatprep.subr.bf16.mxu0 0
    %205 = vmatpush1.bf16.msra.mxu0 %v186
    %206 = vmatprep.subr.bf16.mxu0 0
    %207 = vmatpush1.bf16.msra.mxu0 %v185
    %208 = vmatprep.subr.bf16.mxu0 0
    %209 = vmatpush1.bf16.msra.mxu0 %v184
    %210 = vmatprep.subr.bf16.mxu0 0
    %211 = vmatpush1.bf16.msra.mxu0 %v183
    %212 = vmatprep.subr.bf16.mxu0 0
    %213 = vmatpush1.bf16.msra.mxu0 %v182
    %214 = vmatprep.subr.bf16.mxu0 0
    %215 = vmatpush2.bf16.msra.mxu0 0
    %216 = vmatprep.subr.bf16.mxu0 0
    %217 = vmatpush2.bf16.msra.mxu0 0
    %218 = vmatprep.subr.bf16.mxu0 0
    %219 = vmatpush2.bf16.msra.mxu0 0
    %220 = vmatprep.subr.bf16.mxu0 0
    %221 = vmatpush2.bf16.msra.mxu0 0
    %222 = vmatprep.subr.bf16.mxu0 0
    %223 = vmatpush2.bf16.msra.mxu0 0
    %224 = vmatprep.subr.bf16.mxu0 0
    %225 = vmatpush2.bf16.msra.mxu0 0
    %226 = vmatprep.subr.bf16.mxu0 0
    %227 = vmatpush2.bf16.msra.mxu0 0
    %228 = vmatprep.subr.bf16.mxu0 0
    %229 = vmatpush2.bf16.msra.mxu0 0
    %230 = vmatprep.mubr.bf16.mxu0 0
    %231 = vmatmul.mubr.bf16.gmra.mxu0 %v124
    %v232 = vpop.f32.mrf.mxu0
    %v233 = vadd.f32 %v148, %v232
    %v234 = vpop.f32.mrf.mxu0
    %v235 = vpop.f32.mrf.mxu0
    %v236 = vpop.f32.mrf.mxu0
    %237 = vdwg.mxu0
    %v238 = vmax.f32 %v233, 0.0
    %v239 = vpack.c.bf16 %v238, %v238
    %s240 = scalar_lea.vmem [#allocation4], 128
    %v241 = vld [vmem:[%s240] sm:$0xf]
    %v242 = vld [vmem:[%s240 + $0x4] sm:$0xf]
    %v243 = vld [vmem:[%s240 + $0x8] sm:$0xf]
    %v244 = vld [vmem:[%s240 + $0xc] sm:$0xf]
    %v245 = vld [vmem:[%s240 + $0x10] sm:$0xf]
    %v246 = vld [vmem:[%s240 + $0x14] sm:$0xf]
    %v247 = vld [vmem:[%s240 + $0x18] sm:$0xf]
    %v248 = vld [vmem:[%s240 + $0x1c] sm:$0xf]
    %v249 = vld [vmem:[%s240 + $0x20] sm:$0xf]
    %v250 = vld [vmem:[%s240 + $0x24] sm:$0xf]
    %v251 = vld [vmem:[%s240 + $0x28] sm:$0xf]
    %v252 = vld [vmem:[%s240 + $0x2c] sm:$0xf]
    %v253 = vld [vmem:[%s240 + $0x30] sm:$0xf]
    %v254 = vld [vmem:[%s240 + $0x34] sm:$0xf]
    %v255 = vld [vmem:[%s240 + $0x38] sm:$0xf]
    %v256 = vld [vmem:[%s240 + $0x3c] sm:$0xf]
    %s257 = scalar_lea.vmem [#allocation6], 2
    %v258 = vld [vmem:[%s257] sm:$0x1]
    %v260 = vlaneseq
    %v261 = vshrl.u32 %v260, 7
    %v262 = vsub.s32 0, %v261
    %v263 = vrot.slane %v258, %v262
    %v281 = vunpack.c.l.b16 %v241
    %v282 = vunpack.c.l.b16 %v242
    %v283 = vunpack.c.l.b16 %v243
    %v284 = vunpack.c.l.b16 %v244
    %v285 = vunpack.c.l.b16 %v245
    %v286 = vunpack.c.l.b16 %v246
    %v287 = vunpack.c.l.b16 %v247
    %v288 = vunpack.c.l.b16 %v248
    %v289 = vunpack.c.l.b16 %v249
    %v290 = vunpack.c.l.b16 %v250
    %v291 = vunpack.c.l.b16 %v251
    %v292 = vunpack.c.l.b16 %v252
    %v293 = vunpack.c.l.b16 %v253
    %v294 = vunpack.c.l.b16 %v254
    %v295 = vunpack.c.l.b16 %v255
    %v296 = vunpack.c.l.b16 %v256
    %v297 = vpack.c.b16 %v282, %v281
    %v298 = vpack.c.b16 %v284, %v283
    %v299 = vpack.c.b16 %v286, %v285
    %v300 = vpack.c.b16 %v288, %v287
    %v301 = vpack.c.b16 %v290, %v289
    %v302 = vpack.c.b16 %v292, %v291
    %v303 = vpack.c.b16 %v294, %v293
    %v304 = vpack.c.b16 %v296, %v295
    %313 = vmatprep.subr.bf16.mxu0 0
    %314 = vmatpush1.bf16.msra.mxu0 %v304
    %315 = vmatprep.subr.bf16.mxu0 0
    %316 = vmatpush1.bf16.msra.mxu0 %v303
    %317 = vmatprep.subr.bf16.mxu0 0
    %318 = vmatpush1.bf16.msra.mxu0 %v302
    %319 = vmatprep.subr.bf16.mxu0 0
    %320 = vmatpush1.bf16.msra.mxu0 %v301
    %321 = vmatprep.subr.bf16.mxu0 0
    %322 = vmatpush1.bf16.msra.mxu0 %v300
    %323 = vmatprep.subr.bf16.mxu0 0
    %324 = vmatpush1.bf16.msra.mxu0 %v299
    %325 = vmatprep.subr.bf16.mxu0 0
    %326 = vmatpush1.bf16.msra.mxu0 %v298
    %327 = vmatprep.subr.bf16.mxu0 0
    %328 = vmatpush1.bf16.msra.mxu0 %v297
    %329 = vmatprep.subr.bf16.mxu0 0
    %330 = vmatpush2.bf16.msra.mxu0 0
    %331 = vmatprep.subr.bf16.mxu0 0
    %332 = vmatpush2.bf16.msra.mxu0 0
    %333 = vmatprep.subr.bf16.mxu0 0
    %334 = vmatpush2.bf16.msra.mxu0 0
    %335 = vmatprep.subr.bf16.mxu0 0
    %336 = vmatpush2.bf16.msra.mxu0 0
    %337 = vmatprep.subr.bf16.mxu0 0
    %338 = vmatpush2.bf16.msra.mxu0 0
    %339 = vmatprep.subr.bf16.mxu0 0
    %340 = vmatpush2.bf16.msra.mxu0 0
    %341 = vmatprep.subr.bf16.mxu0 0
    %342 = vmatpush2.bf16.msra.mxu0 0
    %343 = vmatprep.subr.bf16.mxu0 0
    %344 = vmatpush2.bf16.msra.mxu0 0
    %345 = vmatprep.mubr.bf16.mxu0 0
    %346 = vmatmul.mubr.bf16.gmra.mxu0 %v239
    %v347 = vpop.f32.mrf.mxu0
    %v348 = vadd.f32 %v263, %v347
    %v349 = vpop.f32.mrf.mxu0
    %v350 = vpop.f32.mrf.mxu0
    %v351 = vpop.f32.mrf.mxu0
    %352 = vdwg.mxu0
    %v353 = vmax.f32 %v348, 0.0
    %v354 = vpack.c.bf16 %v353, %v353
    %s355 = scalar_lea.vmem [#allocation4], 192
    %v356 = vld [vmem:[%s355] sm:$0xf]
    %v357 = vld [vmem:[%s355 + $0x4] sm:$0xf]
    %v358 = vld [vmem:[%s355 + $0x8] sm:$0xf]
    %v359 = vld [vmem:[%s355 + $0xc] sm:$0xf]
    %v360 = vld [vmem:[%s355 + $0x10] sm:$0xf]
    %v361 = vld [vmem:[%s355 + $0x14] sm:$0xf]
    %v362 = vld [vmem:[%s355 + $0x18] sm:$0xf]
    %v363 = vld [vmem:[%s355 + $0x1c] sm:$0xf]
    %v364 = vld [vmem:[%s355 + $0x20] sm:$0xf]
    %v365 = vld [vmem:[%s355 + $0x24] sm:$0xf]
    %v366 = vld [vmem:[%s355 + $0x28] sm:$0xf]
    %v367 = vld [vmem:[%s355 + $0x2c] sm:$0xf]
    %v368 = vld [vmem:[%s355 + $0x30] sm:$0xf]
    %v369 = vld [vmem:[%s355 + $0x34] sm:$0xf]
    %v370 = vld [vmem:[%s355 + $0x38] sm:$0xf]
    %v371 = vld [vmem:[%s355 + $0x3c] sm:$0xf]
    %s372 = scalar_lea.vmem [#allocation6], 3
    %v373 = vld [vmem:[%s372] sm:$0x1]
    %v375 = vlaneseq
    %v376 = vshrl.u32 %v375, 7
    %v377 = vsub.s32 0, %v376
    %v378 = vrot.slane %v373, %v377
    %v396 = vunpack.c.l.b16 %v356
    %v397 = vunpack.c.l.b16 %v357
    %v398 = vunpack.c.l.b16 %v358
    %v399 = vunpack.c.l.b16 %v359
    %v400 = vunpack.c.l.b16 %v360
    %v401 = vunpack.c.l.b16 %v361
    %v402 = vunpack.c.l.b16 %v362
    %v403 = vunpack.c.l.b16 %v363
    %v404 = vunpack.c.l.b16 %v364
    %v405 = vunpack.c.l.b16 %v365
    %v406 = vunpack.c.l.b16 %v366
    %v407 = vunpack.c.l.b16 %v367
    %v408 = vunpack.c.l.b16 %v368
    %v409 = vunpack.c.l.b16 %v369
    %v410 = vunpack.c.l.b16 %v370
    %v411 = vunpack.c.l.b16 %v371
    %v412 = vpack.c.b16 %v397, %v396
    %v413 = vpack.c.b16 %v399, %v398
    %v414 = vpack.c.b16 %v401, %v400
    %v415 = vpack.c.b16 %v403, %v402
    %v416 = vpack.c.b16 %v405, %v404
    %v417 = vpack.c.b16 %v407, %v406
    %v418 = vpack.c.b16 %v409, %v408
    %v419 = vpack.c.b16 %v411, %v410
    %428 = vmatprep.subr.bf16.mxu0 0
    %429 = vmatpush1.bf16.msra.mxu0 %v419
    %430 = vmatprep.subr.bf16.mxu0 0
    %431 = vmatpush1.bf16.msra.mxu0 %v418
    %432 = vmatprep.subr.bf16.mxu0 0
    %433 = vmatpush1.bf16.msra.mxu0 %v417
    %434 = vmatprep.subr.bf16.mxu0 0
    %435 = vmatpush1.bf16.msra.mxu0 %v416
    %436 = vmatprep.subr.bf16.mxu0 0
    %437 = vmatpush1.bf16.msra.mxu0 %v415
    %438 = vmatprep.subr.bf16.mxu0 0
    %439 = vmatpush1.bf16.msra.mxu0 %v414
    %440 = vmatprep.subr.bf16.mxu0 0
    %441 = vmatpush1.bf16.msra.mxu0 %v413
    %442 = vmatprep.subr.bf16.mxu0 0
    %443 = vmatpush1.bf16.msra.mxu0 %v412
    %444 = vmatprep.subr.bf16.mxu0 0
    %445 = vmatpush2.bf16.msra.mxu0 0
    %446 = vmatprep.subr.bf16.mxu0 0
    %447 = vmatpush2.bf16.msra.mxu0 0
    %448 = vmatprep.subr.bf16.mxu0 0
    %449 = vmatpush2.bf16.msra.mxu0 0
    %450 = vmatprep.subr.bf16.mxu0 0
    %451 = vmatpush2.bf16.msra.mxu0 0
    %452 = vmatprep.subr.bf16.mxu0 0
    %453 = vmatpush2.bf16.msra.mxu0 0
    %454 = vmatprep.subr.bf16.mxu0 0
    %455 = vmatpush2.bf16.msra.mxu0 0
    %456 = vmatprep.subr.bf16.mxu0 0
    %457 = vmatpush2.bf16.msra.mxu0 0
    %458 = vmatprep.subr.bf16.mxu0 0
    %459 = vmatpush2.bf16.msra.mxu0 0
    %460 = vmatprep.mubr.bf16.mxu0 0
    %461 = vmatmul.mubr.bf16.gmra.mxu0 %v354
    %v462 = vpop.f32.mrf.mxu0
    %v463 = vadd.f32 %v378, %v462
    %v464 = vpop.f32.mrf.mxu0
    %v465 = vpop.f32.mrf.mxu0
    %v466 = vpop.f32.mrf.mxu0
    %467 = vdwg.mxu0
    %vm468 = vcmask 31744
    %469 = vst.msk [vmem:[%s3] sm:$0xff] %vm468, %v463
    // Predicated region
    $region26: #{_fused_forward.1} parent=1 // pred_check
      _
    $region27: #{_fused_forward.1} parent=1 // pred_check_branch
      %471 = sbr.rel (0) target = $region29
    $region28: #{_fused_forward.1} parent=1 // pred_region
      _
    $region29: #{_fused_forward.1} parent=1 // pred_fallthru
      _
    // Predicated region
    $region30: #{_fused_forward.1} parent=1 // pred_check
      _
    $region31: #{_fused_forward.1} parent=1 // pred_check_branch
      %473 = sbr.rel (0) target = $region33
    $region32: #{_fused_forward.1} parent=1 // pred_region
      _
    $region33: #{_fused_forward.1} parent=1 // pred_fallthru
      _
    %474 = vsyncpa [#allocation3], 1
    %475 = vsyncpa [#allocation5], 1

</llo_original>
